<compile_context>
chip_gen: v7x
topology: tpu7x:2x2x1
jax: 0.10.0
libtpu: 0.0.40
codegen_flags: <defaults>
</compile_context>

<pallas_src>
import functools

import jax
import jax.numpy as jnp
from jax import lax
from jax.experimental import pallas as pl
from jax.experimental.pallas import tpu as pltpu


def _subst_weight_kernel(x_ref, lat_ref, emb_ref, wdec_ref, xb_ref, bias_ref,
                         o_ref, z_ref, *, tile_i, compute_dtype):
    ii = pl.program_id(1)  # reduction index over I tiles (trailing grid axis)

    @pl.when(ii == 0)
    def _init():
        # z = latent + E[ids] depends only on the O tile: compute (and cast)
        # once per oi and reuse it for every reduction step.
        z_ref[...] = (lat_ref[...] + emb_ref[...]).astype(compute_dtype)
        # Seed the VMEM-resident output block with module_bias + (x . b_dec);
        # matmul partials then accumulate directly into o_ref (no extra acc).
        o_ref[...] = (bias_ref[...] + xb_ref[...]).astype(o_ref.dtype)

    i0 = pl.multiple_of(ii * tile_i, tile_i)
    x = x_ref[:, pl.ds(i0, tile_i)]          # (B, TI)  resident in VMEM
    wdec = wdec_ref[:, pl.ds(i0, tile_i)]    # (L, TI)  resident in VMEM

    # ---- Stage 1: decode a (TO, TI) tile:  decoded = z @ w_dec --------------
    decoded = jnp.dot(z_ref[...], wdec,
                      preferred_element_type=compute_dtype)     # (TO, TI)

    # ---- Stage 2: out += x @ decoded^T  (transposed-RHS contraction keeps the
    # (B, TO) output lane-dense); accumulate in f32.
    part = lax.dot_general(
        x, decoded,
        dimension_numbers=(((1,), (1,)), ((), ())),
        preferred_element_type=jnp.float32)                     # (B, TO)

    o_ref[...] += part


def _vmem_limit_bytes(needed_bytes):
    try:
        cap = int(pltpu.get_tpu_info().vmem_capacity_bytes)
    except Exception:
        cap = 64 * 1024 * 1024  # conservative fallback: v7x per-TC VMEM
    # Never request the full physical VMEM; leave pipelining headroom.
    return int(min(max(needed_bytes, 32 * 1024 * 1024), int(0.85 * cap)))


def substitution_weight_forward(x, latent_weights, id_embedding, w_dec, b_dec,
                                module_bias, *, tile_o=512, tile_i=512,
                                use_bf16_matmul=True):
    B, I = x.shape
    O, L = latent_weights.shape
    assert id_embedding.shape == (O, L)
    assert w_dec.shape == (L, I)
    assert b_dec.shape == (I,)
    assert module_bias.shape == (O,)

    tile_o = min(tile_o, O)
    tile_i = min(tile_i, I)
    # Keep >= 2 O-tiles when possible so the "parallel" O axis can still shard
    # across the 2 TensorCores of a v7x megacore.
    while O // tile_o < 2 and tile_o > 128 and O % (tile_o // 2) == 0:
        tile_o //= 2
    assert O % tile_o == 0 and I % tile_i == 0, "O and I must divide by tiles"
    assert tile_o % 128 == 0 and tile_i % 128 == 0, "keep MXU dims 128-aligned"

    # bf16 operands with f32 accumulation is the fast MXU path on v5e/v6e/v7x
    # (f32 matmul is a multi-pass emulation on the MXU); f32 kept for checking.
    op_dtype = jnp.bfloat16 if use_bf16_matmul else jnp.float32
    x_op = x.astype(op_dtype)
    lat_op = latent_weights.astype(op_dtype)
    emb_op = id_embedding.astype(op_dtype)
    wdec_op = w_dec.astype(op_dtype)

    # (x . b_dec) is independent of O: compute it once here (f32) instead of
    # re-reducing it on every grid step inside the kernel.
    xb = (x.astype(jnp.float32) @ b_dec.astype(jnp.float32)).reshape(B, 1)
    bias_2d = module_bias.astype(jnp.float32).reshape(1, O)

    grid = (O // tile_o, I // tile_i)

    itemsize = jnp.dtype(op_dtype).itemsize
    needed = int(
        2 * B * I * itemsize              # x, resident (buffer pair)
        + 2 * L * I * itemsize            # w_dec, resident (buffer pair)
        + 2 * 2 * tile_o * L * itemsize   # latent + emb tiles, double-buffered
        + 2 * (tile_o + B) * 4            # bias / xb blocks
        + 2 * B * tile_o * 4              # output tile, double-buffered
        + tile_o * L * itemsize           # z scratch
        + tile_o * tile_i * itemsize      # decoded intermediate
        + 4 * 1024 * 1024                 # headroom for compiler temps / spills
    )

    flops = 2 * O * L * I + 2 * B * I * O
    bytes_accessed = int(
        (x_op.size + lat_op.size + emb_op.size + wdec_op.size) * itemsize
        + 4 * (bias_2d.size + xb.size + B * O))

    kernel = functools.partial(_subst_weight_kernel, tile_i=tile_i,
                               compute_dtype=op_dtype)

    return pl.pallas_call(
        kernel,
        out_shape=jax.ShapeDtypeStruct((B, O), jnp.float32),
        grid_spec=pltpu.PrefetchScalarGridSpec(
            num_scalar_prefetch=0,
            grid=grid,
            in_specs=[
                pl.BlockSpec((B, I), lambda oi, ii: (0, 0)),        # x (resident)
                pl.BlockSpec((tile_o, L), lambda oi, ii: (oi, 0)),  # latent
                pl.BlockSpec((tile_o, L), lambda oi, ii: (oi, 0)),  # id embedding
                pl.BlockSpec((L, I), lambda oi, ii: (0, 0)),        # w_dec (resident)
                pl.BlockSpec((B, 1), lambda oi, ii: (0, 0)),        # x . b_dec
                pl.BlockSpec((1, tile_o), lambda oi, ii: (0, oi)),  # module_bias
            ],
            out_specs=pl.BlockSpec((B, tile_o), lambda oi, ii: (0, oi)),
            scratch_shapes=[pltpu.VMEM((tile_o, L), op_dtype)],     # z tile
        ),
        compiler_params=pltpu.CompilerParams(
            dimension_semantics=("parallel", "arbitrary"),
            vmem_limit_bytes=_vmem_limit_bytes(needed),
        ),
        cost_estimate=pl.CostEstimate(flops=flops, transcendentals=0,
                                      bytes_accessed=bytes_accessed),
    )(x_op, lat_op, emb_op, wdec_op, xb, bias_2d)


def reference_forward(x, latent_weights, id_embedding, w_dec, b_dec,
                      module_bias):
    hp = jax.lax.Precision.HIGHEST
    decoded = jnp.dot(latent_weights + id_embedding, w_dec,
                      precision=hp) + b_dec                      # (O, I)
    return jnp.dot(x, decoded.T, precision=hp) + module_bias     # (B, O)


if __name__ == "__main__":
    # Small but tiling-exercising, 128-aligned shapes.
    B, I, O, L = 8, 512, 512, 128

    key = jax.random.PRNGKey(0)
    k_x, k_lat, k_emb, k_wd, k_bd, k_b = jax.random.split(key, 6)

    x = jax.random.normal(k_x, (B, I), dtype=jnp.float32)
    latent_weights = jax.random.normal(k_lat, (O, L), dtype=jnp.float32) * 0.1
    id_embedding = jax.random.normal(k_emb, (O, L), dtype=jnp.float32) * 0.1
    w_dec = jax.random.normal(k_wd, (L, I), dtype=jnp.float32) * 0.1
    b_dec = jax.random.normal(k_bd, (I,), dtype=jnp.float32) * 0.1
    module_bias = jax.random.normal(k_b, (O,), dtype=jnp.float32) * 0.1

    ref = reference_forward(x, latent_weights, id_embedding, w_dec, b_dec,
                            module_bias)
    ref_scale = jnp.max(jnp.abs(ref)) + 1e-6

    # f32 MXU path, explicit small tiles -> grid = (2, 2), exercises both the
    # parallel O axis and the trailing reduction over I.
    out_f32 = substitution_weight_forward(
        x, latent_weights, id_embedding, w_dec, b_dec, module_bias,
        tile_o=256, tile_i=256, use_bf16_matmul=False)
    out_f32 = jax.block_until_ready(out_f32)
    assert out_f32.shape == (B, O)
    rel_f32 = float(jnp.max(jnp.abs(out_f32 - ref)) / ref_scale)
    assert rel_f32 < 2e-2, f"f32 path rel err {rel_f32}"

    # bf16-operand MXU path (f32 accumulation), default tile selection.
    out_bf16 = substitution_weight_forward(
        x, latent_weights, id_embedding, w_dec, b_dec, module_bias,
        use_bf16_matmul=True)
    out_bf16 = jax.block_until_ready(out_bf16)
    assert out_bf16.shape == (B, O)
    rel_bf16 = float(jnp.max(jnp.abs(out_bf16 - ref)) / ref_scale)
    assert rel_bf16 < 5e-2, f"bf16 path rel err {rel_bf16}"

    print("KERNEL_OK")
</pallas_src>

<mosaic_0001>
module attributes {stable_mosaic.version = 11 : i64} {
  func.func @_subst_weight_kernel(%arg0: i32, %arg1: i32, %arg2: memref<8x512xf32, #tpu.memory_space<vmem>>, %arg3: memref<256x128xf32, #tpu.memory_space<vmem>>, %arg4: memref<256x128xf32, #tpu.memory_space<vmem>>, %arg5: memref<128x512xf32, #tpu.memory_space<vmem>>, %arg6: memref<8x1xf32, #tpu.memory_space<vmem>>, %arg7: memref<1x256xf32, #tpu.memory_space<vmem>>, %arg8: memref<8x256xf32, #tpu.memory_space<vmem>>, %arg9: memref<256x128xf32, #tpu.memory_space<vmem>>) attributes {dimension_semantics = [#tpu.dimension_semantics<parallel>, #tpu.dimension_semantics<arbitrary>], iteration_bounds = array<i64: 2, 2>, scalar_prefetch = 0 : i64, scratch_operands = 1 : i64, tpu.core_type = #tpu.core_type<tc>, window_params = [{pipeline_mode = #tpu.pipeline_mode<synchronous>, transform_indices = @transform_0, window_bounds = array<i64: 8, 512>}, {transform_indices = @transform_1, window_bounds = array<i64: 256, 128>}, {transform_indices = @transform_2, window_bounds = array<i64: 256, 128>}, {pipeline_mode = #tpu.pipeline_mode<synchronous>, transform_indices = @transform_3, window_bounds = array<i64: 128, 512>}, {pipeline_mode = #tpu.pipeline_mode<synchronous>, transform_indices = @transform_4, window_bounds = array<i64: 8, 1>}, {transform_indices = @transform_5, window_bounds = array<i64: 1, 256>}, {transform_indices = @transform_6, window_bounds = array<i64: 8, 256>}]} {
    %c0_i32 = arith.constant 0 : i32
    %0 = arith.cmpi eq, %arg1, %c0_i32 : i32
    %1 = arith.extui %0 : i1 to i32
    %c0_i32_0 = arith.constant 0 : i32
    %2 = arith.cmpi ne, %1, %c0_i32_0 : i32
    scf.if %2 {
      %c0_9 = arith.constant 0 : index
      %c0_10 = arith.constant 0 : index
      %15 = vector.load %arg3[%c0_9, %c0_10] : memref<256x128xf32, #tpu.memory_space<vmem>>, vector<256x128xf32>
      %c0_11 = arith.constant 0 : index
      %c0_12 = arith.constant 0 : index
      %16 = vector.load %arg4[%c0_11, %c0_12] : memref<256x128xf32, #tpu.memory_space<vmem>>, vector<256x128xf32>
      %17 = arith.addf %15, %16 : vector<256x128xf32>
      %c0_13 = arith.constant 0 : index
      %c0_14 = arith.constant 0 : index
      %18 = vector.load %arg9[%c0_13, %c0_14] : memref<256x128xf32, #tpu.memory_space<vmem>>, vector<256x128xf32>
      tpu.vector_store %arg9[%c0_13, %c0_14], %17 {strides = array<i32>} : memref<256x128xf32, #tpu.memory_space<vmem>>, vector<256x128xf32>,
      %c0_15 = arith.constant 0 : index
      %c0_16 = arith.constant 0 : index
      %19 = vector.load %arg7[%c0_15, %c0_16] : memref<1x256xf32, #tpu.memory_space<vmem>>, vector<1x256xf32>
      %c0_17 = arith.constant 0 : index
      %c0_18 = arith.constant 0 : index
      %20 = vector.load %arg6[%c0_17, %c0_18] : memref<8x1xf32, #tpu.memory_space<vmem>>, vector<8x1xf32>
      %21 = vector.broadcast %19 : vector<1x256xf32> to vector<8x256xf32>
      %22 = vector.broadcast %20 : vector<8x1xf32> to vector<8x256xf32>
      %23 = arith.addf %21, %22 : vector<8x256xf32>
      %c0_19 = arith.constant 0 : index
      %c0_20 = arith.constant 0 : index
      %24 = vector.load %arg8[%c0_19, %c0_20] : memref<8x256xf32, #tpu.memory_space<vmem>>, vector<8x256xf32>
      tpu.vector_store %arg8[%c0_19, %c0_20], %23 {strides = array<i32>} : memref<8x256xf32, #tpu.memory_space<vmem>>, vector<8x256xf32>,
    } else {
    }
    %c256_i32 = arith.constant 256 : i32
    %3 = arith.muli %arg1, %c256_i32 : i32
    %4 = tpu.assume_multiple %3, 256 : i32
    %c0 = arith.constant 0 : index
    %5 = arith.index_cast %4 : i32 to index
    %6 = vector.load %arg2[%c0, %5] : memref<8x512xf32, #tpu.memory_space<vmem>>, vector<8x256xf32>
    %c0_1 = arith.constant 0 : index
    %7 = arith.index_cast %4 : i32 to index
    %8 = vector.load %arg5[%c0_1, %7] : memref<128x512xf32, #tpu.memory_space<vmem>>, vector<128x256xf32>
    %c0_2 = arith.constant 0 : index
    %c0_3 = arith.constant 0 : index
    %9 = vector.load %arg9[%c0_2, %c0_3] : memref<256x128xf32, #tpu.memory_space<vmem>>, vector<256x128xf32>
    %cst = arith.constant dense<0.000000e+00> : vector<256x256xf32>
    %10 = tpu.matmul %9, %8, %cst {dimension_numbers = #tpu.dot_dimension_numbers<[1], [0], [0], [1], [0, 0, 1, 1], [], []>} : vector<256x128xf32>, vector<128x256xf32>, vector<256x256xf32> -> vector<256x256xf32>
    %cst_4 = arith.constant dense<0.000000e+00> : vector<8x256xf32>
    %11 = tpu.matmul %6, %10, %cst_4 {dimension_numbers = #tpu.dot_dimension_numbers<[1], [1], [0], [0], [0, 0, 1, 0], [], []>} : vector<8x256xf32>, vector<256x256xf32>, vector<8x256xf32> -> vector<8x256xf32>
    %c0_5 = arith.constant 0 : index
    %c0_6 = arith.constant 0 : index
    %12 = vector.load %arg8[%c0_5, %c0_6] : memref<8x256xf32, #tpu.memory_space<vmem>>, vector<8x256xf32>
    %13 = arith.addf %12, %11 : vector<8x256xf32>
    %c0_7 = arith.constant 0 : index
    %c0_8 = arith.constant 0 : index
    %14 = vector.load %arg8[%c0_7, %c0_8] : memref<8x256xf32, #tpu.memory_space<vmem>>, vector<8x256xf32>
    tpu.vector_store %arg8[%c0_7, %c0_8], %13 {strides = array<i32>} : memref<8x256xf32, #tpu.memory_space<vmem>>, vector<8x256xf32>,
    return
  }
  func.func @transform_0(%arg0: i32, %arg1: i32) -> (i32, i32) {
    %c0_i32 = arith.constant 0 : i32
    %c0_i32_0 = arith.constant 0 : i32
    %c0_i32_1 = arith.constant 0 : i32
    return %c0_i32, %c0_i32_0 : i32, i32
  }
  func.func @transform_1(%arg0: i32, %arg1: i32) -> (i32, i32) {
    %c0_i32 = arith.constant 0 : i32
    %c0_i32_0 = arith.constant 0 : i32
    return %arg0, %c0_i32 : i32, i32
  }
  func.func @transform_2(%arg0: i32, %arg1: i32) -> (i32, i32) {
    %c0_i32 = arith.constant 0 : i32
    %c0_i32_0 = arith.constant 0 : i32
    return %arg0, %c0_i32 : i32, i32
  }
  func.func @transform_3(%arg0: i32, %arg1: i32) -> (i32, i32) {
    %c0_i32 = arith.constant 0 : i32
    %c0_i32_0 = arith.constant 0 : i32
    %c0_i32_1 = arith.constant 0 : i32
    return %c0_i32, %c0_i32_0 : i32, i32
  }
  func.func @transform_4(%arg0: i32, %arg1: i32) -> (i32, i32) {
    %c0_i32 = arith.constant 0 : i32
    %c0_i32_0 = arith.constant 0 : i32
    %c0_i32_1 = arith.constant 0 : i32
    return %c0_i32, %c0_i32_0 : i32, i32
  }
  func.func @transform_5(%arg0: i32, %arg1: i32) -> (i32, i32) {
    %c0_i32 = arith.constant 0 : i32
    %c0_i32_0 = arith.constant 0 : i32
    return %c0_i32, %arg0 : i32, i32
  }
  func.func @transform_6(%arg0: i32, %arg1: i32) -> (i32, i32) {
    %c0_i32 = arith.constant 0 : i32
    %c0_i32_0 = arith.constant 0 : i32
    return %c0_i32, %arg0 : i32, i32
  }
}

</mosaic_0001>

<llo_original>
// kernel: tpu_custom_call.1
$region0: #{tpu_custom_call.1}
  #allocation0 [shape = 'u32[]', space=smem, size = 0x4, offset = 0x4, fixed_abs, tag = 'smem constant byte address 0x4 - core index']
  #allocation1 [shape = 'u32[144,128]{1,0:T(1,128)}', space=vmem, size = 0x12000, scoped, tag = 'internal scratch']
  #allocation2 [shape = 'f32[256,128]{1,0:T(8,128)}', space=vmem, size = 0x20000, scoped, tag = 'scratch operand']
  %s0 = inlined_call_operand.hbm [shape: f32[8,512], index: 0, kind: input, shape index: {}]
  %s1 = inlined_call_operand.hbm [shape: f32[512,128], index: 1, kind: input, shape index: {}]
  %s2 = inlined_call_operand.hbm [shape: f32[512,128], index: 2, kind: input, shape index: {}]
  %s3 = inlined_call_operand.hbm [shape: f32[128,512], index: 3, kind: input, shape index: {}]
  %s4 = inlined_call_operand.vmem [shape: f32[8,1], index: 4, kind: input, shape index: {}]
  %s5 = inlined_call_operand.vmem [shape: f32[1,512], index: 5, kind: input, shape index: {}]
  %s6 = inlined_call_operand.hbm [shape: f32[8,512], index: 6, kind: output, shape index: {}]
  %s7 = sld [smem:[#allocation0]]
  $region77: #{tpu_custom_call.1} parent=0
    _
  %s9 = ssub.s32 1, %s7
  %s10 = scalar_select 0, %s9, %s7
  $region1: #{tpu_custom_call.1} parent=0
    #allocation3 [shape = 'u8[16384]{0}', space=vmem, size = 0x4000, scoped, tag = 'input window, operand 0, single buffered']
    #allocation4 [shape = 's32[2]{0}', space=sflag, size = 0x8, scoped, tag = 'scoped memory for tpu_custom_call.1']
    #allocation5 [shape = 's32[2]{0}', space=sflag, size = 0x8, scoped, tag = 'scoped memory for tpu_custom_call.1']
    #allocation6 [shape = 'u8[262144]{0}', space=vmem, size = 0x40000, scoped, tag = 'input window, operand 1']
    #allocation7 [shape = 's32[2]{0}', space=sflag, size = 0x8, scoped, tag = 'scoped memory for tpu_custom_call.1']
    #allocation8 [shape = 'u8[262144]{0}', space=vmem, size = 0x40000, scoped, tag = 'input window, operand 2']
    #allocation9 [shape = 'u8[262144]{0}', space=vmem, size = 0x40000, scoped, tag = 'input window, operand 3, single buffered']
    #allocation10 [shape = 's32[1]{0}', space=sflag, size = 0x4, scoped, tag = 'scoped memory for tpu_custom_call.1']
    #allocation11 [shape = 'u8[16384]{0}', space=vmem, size = 0x4000, scoped, tag = 'output window, operand 0']
    %11 = vsyncpa [#allocation4], 0
    %12 = vsyncpa [#allocation7], 0
    %s13 = scalar_lea.sflag [#allocation7], 1
    %14 = vsyncpa %s13, 0
    %15 = vsyncpa [#allocation10], 0
    %16 = vsyncpa [#allocation5], 0
    %s17 = scalar_lea.sflag [#allocation5], 1
    %18 = vsyncpa %s17, 0
    loop: start=0, step=1, limit=6
    $region2: #{tpu_custom_call.1} parent=1 // loop_pre_header
      _
    $region3: #{tpu_custom_call.1} parent=1 // loop_header
      %s20 = sphi 0, %s24
      %p21 = scmp.ge.s32.totalorder %s20, 6
      %s27 = sphi 0, %s39
      %s28 = sphi 0, %s35
      %s29 = sphi 0, %s27
      %s30 = sphi 0, %s28
      %s31 = sphi 0, %s29
      %s32 = sphi 0, %s30
      %s40 = sphi 0, %s40
      %s42 = sphi 0, %s40
      %s43 = sphi 0, %s42
      %s57 = sphi 0, %s43
      %s63 = sphi 0, %s65
      %s66 = sphi 0, %s63
      %s67 = sphi 0, %s66
      %s83 = sphi 0, %s67
      %s89 = sphi 0, %s91
      %s92 = sphi 0, %s89
      %s93 = sphi 0, %s92
      %s109 = sphi 0, %s93
      %s113 = sphi 0, %s113
      %s115 = sphi 0, %s113
      %s116 = sphi 0, %s115
      %s130 = sphi 0, %s116
      %s134 = sphi 0, %s134
      %s136 = sphi 0, %s134
      %s137 = sphi 0, %s136
      %s151 = sphi 0, %s137
      %s157 = sphi 0, %s159
      %s160 = sphi 0, %s157
      %s161 = sphi 0, %s160
      %s177 = sphi 0, %s161
      %s183 = sphi 0, %s185
      %s186 = sphi 0, %s183
      %s187 = sphi 0, %s186
      %s203 = sphi 0, %s187
    $region4: #{tpu_custom_call.1} parent=1 // loop_header_branch
      %23 = sbr.rel (%p21) target = $region8
    $region5: #{tpu_custom_call.1} parent=1 // loop_body
      %s25 = ssub.s32 %s20, 1
      %s26 = ssub.s32 %s20, 2
      %s33 = sadd.s32 1, %s28
      %p34 = scmp.ge.s32.totalorder %s33, 2
      %s35 = scalar_select %p34, 0, %s33
      %s36 = sadd.s32 1, %s27
      %s37 = scalar_select %p34, %s36, %s27
      %p38 = scmp.ge.s32.totalorder %s37, 2
      %s39 = scalar_select %p38, 0, %s37
      %s41 = sadd.s32 %s40, 1
      %p44 = scmp.eq.s32.totalorder %s20, 3
      %p45 = scmp.ne.s32.totalorder %s40, %s42
      %p46 = scmp.eq.s32.totalorder %s20, 0
      %p47 = por %p45, %p46
      %p48 = scmp.ne.s32.totalorder %s40, %s42
      %p49 = scmp.eq.s32.totalorder %s25, 3
      %p50 = por %p48, %p49
      %p51 = scmp.ne.s32.totalorder %s42, %s43
      %p52 = scmp.eq.s32.totalorder %s25, 0
      %p53 = por %p51, %p52
      %p54 = scmp.ne.s32.totalorder %s42, %s43
      %p55 = scmp.eq.s32.totalorder %s26, 3
      %p56 = por %p54, %p55
      %p58 = scmp.ne.s32.totalorder %s43, %s57
      %p59 = scmp.eq.s32.totalorder %s26, 0
      %p60 = por %p58, %p59
      %s61 = ssub.s32 %s27, %s39
      %p62 = scmp.eq.s32.totalorder %s61, 0
      %s64 = sadd.s32 %s63, 1
      %s65 = scalar_select %p62, %s63, %s64
      %p68 = pneg %p62
      %p69 = scmp.eq.s32.totalorder %s20, 3
      %p70 = por %p68, %p69
      %p71 = scmp.ne.s32.totalorder %s63, %s66
      %p72 = scmp.eq.s32.totalorder %s20, 0
      %p73 = por %p71, %p72
      %p74 = scmp.ne.s32.totalorder %s63, %s66
      %p75 = scmp.eq.s32.totalorder %s25, 3
      %p76 = por %p74, %p75
      %p77 = scmp.ne.s32.totalorder %s66, %s67
      %p78 = scmp.eq.s32.totalorder %s25, 0
      %p79 = por %p77, %p78
      %p80 = scmp.ne.s32.totalorder %s66, %s67
      %p81 = scmp.eq.s32.totalorder %s26, 3
      %p82 = por %p80, %p81
      %p84 = scmp.ne.s32.totalorder %s67, %s83
      %p85 = scmp.eq.s32.totalorder %s26, 0
      %p86 = por %p84, %p85
      %s87 = ssub.s32 %s27, %s39
      %p88 = scmp.eq.s32.totalorder %s87, 0
      %s90 = sadd.s32 %s89, 1
      %s91 = scalar_select %p88, %s89, %s90
      %p94 = pneg %p88
      %p95 = scmp.eq.s32.totalorder %s20, 3
      %p96 = por %p94, %p95
      %p97 = scmp.ne.s32.totalorder %s89, %s92
      %p98 = scmp.eq.s32.totalorder %s20, 0
      %p99 = por %p97, %p98
      %p100 = scmp.ne.s32.totalorder %s89, %s92
      %p101 = scmp.eq.s32.totalorder %s25, 3
      %p102 = por %p100, %p101
      %p103 = scmp.ne.s32.totalorder %s92, %s93
      %p104 = scmp.eq.s32.totalorder %s25, 0
      %p105 = por %p103, %p104
      %p106 = scmp.ne.s32.totalorder %s92, %s93
      %p107 = scmp.eq.s32.totalorder %s26, 3
      %p108 = por %p106, %p107
      %p110 = scmp.ne.s32.totalorder %s93, %s109
      %p111 = scmp.eq.s32.totalorder %s26, 0
      %p112 = por %p110, %p111
      %s114 = sadd.s32 %s113, 1
      %p117 = scmp.eq.s32.totalorder %s20, 3
      %p118 = scmp.ne.s32.totalorder %s113, %s115
      %p119 = scmp.eq.s32.totalorder %s20, 0
      %p120 = por %p118, %p119
      %p121 = scmp.ne.s32.totalorder %s113, %s115
      %p122 = scmp.eq.s32.totalorder %s25, 3
      %p123 = por %p121, %p122
      %p124 = scmp.ne.s32.totalorder %s115, %s116
      %p125 = scmp.eq.s32.totalorder %s25, 0
      %p126 = por %p124, %p125
      %p127 = scmp.ne.s32.totalorder %s115, %s116
      %p128 = scmp.eq.s32.totalorder %s26, 3
      %p129 = por %p127, %p128
      %p131 = scmp.ne.s32.totalorder %s116, %s130
      %p132 = scmp.eq.s32.totalorder %s26, 0
      %p133 = por %p131, %p132
      %s135 = sadd.s32 %s134, 1
      %p138 = scmp.eq.s32.totalorder %s20, 3
      %p139 = scmp.ne.s32.totalorder %s134, %s136
      %p140 = scmp.eq.s32.totalorder %s20, 0
      %p141 = por %p139, %p140
      %p142 = scmp.ne.s32.totalorder %s134, %s136
      %p143 = scmp.eq.s32.totalorder %s25, 3
      %p144 = por %p142, %p143
      %p145 = scmp.ne.s32.totalorder %s136, %s137
      %p146 = scmp.eq.s32.totalorder %s25, 0
      %p147 = por %p145, %p146
      %p148 = scmp.ne.s32.totalorder %s136, %s137
      %p149 = scmp.eq.s32.totalorder %s26, 3
      %p150 = por %p148, %p149
      %p152 = scmp.ne.s32.totalorder %s137, %s151
      %p153 = scmp.eq.s32.totalorder %s26, 0
      %p154 = por %p152, %p153
      %s155 = ssub.s32 %s27, %s39
      %p156 = scmp.eq.s32.totalorder %s155, 0
      %s158 = sadd.s32 %s157, 1
      %s159 = scalar_select %p156, %s157, %s158
      %p162 = pneg %p156
      %p163 = scmp.eq.s32.totalorder %s20, 3
      %p164 = por %p162, %p163
      %p165 = scmp.ne.s32.totalorder %s157, %s160
      %p166 = scmp.eq.s32.totalorder %s20, 0
      %p167 = por %p165, %p166
      %p168 = scmp.ne.s32.totalorder %s157, %s160
      %p169 = scmp.eq.s32.totalorder %s25, 3
      %p170 = por %p168, %p169
      %p171 = scmp.ne.s32.totalorder %s160, %s161
      %p172 = scmp.eq.s32.totalorder %s25, 0
      %p173 = por %p171, %p172
      %p174 = scmp.ne.s32.totalorder %s160, %s161
      %p175 = scmp.eq.s32.totalorder %s26, 3
      %p176 = por %p174, %p175
      %p178 = scmp.ne.s32.totalorder %s161, %s177
      %p179 = scmp.eq.s32.totalorder %s26, 0
      %p180 = por %p178, %p179
      %s181 = ssub.s32 %s27, %s39
      %p182 = scmp.eq.s32.totalorder %s181, 0
      %s184 = sadd.s32 %s183, 1
      %s185 = scalar_select %p182, %s183, %s184
      %p188 = pneg %p182
      %p189 = scmp.eq.s32.totalorder %s20, 3
      %p190 = por %p188, %p189
      %p191 = scmp.ne.s32.totalorder %s183, %s186
      %p192 = scmp.eq.s32.totalorder %s20, 0
      %p193 = por %p191, %p192
      %p194 = scmp.ne.s32.totalorder %s183, %s186
      %p195 = scmp.eq.s32.totalorder %s25, 3
      %p196 = por %p194, %p195
      %p197 = scmp.ne.s32.totalorder %s186, %s187
      %p198 = scmp.eq.s32.totalorder %s25, 0
      %p199 = por %p197, %p198
      %p200 = scmp.ne.s32.totalorder %s186, %s187
      %p201 = scmp.eq.s32.totalorder %s26, 3
      %p202 = por %p200, %p201
      %p204 = scmp.ne.s32.totalorder %s187, %s203
      %p205 = scmp.eq.s32.totalorder %s26, 0
      %p206 = por %p204, %p205
      %p207 = scmp.le.s32.totalorder 1, %s20
      %p208 = scmp.lt.s32.totalorder %s20, 5
      %p209 = pnand %p207, %p208
      %p210 = pneg %p209
      // Predicated region
      $region9: #{tpu_custom_call.1} parent=5 // pred_check
        _
      $region10: #{tpu_custom_call.1} parent=5 // pred_check_branch
        %212 = sbr.rel (%p209) target = $region12
      $region11: #{tpu_custom_call.1} parent=5 // pred_region
        %s213 = ssub.s32 %s20, 1
        // Predicated region
        $region13: #{tpu_custom_call.1} parent=11 // pred_check
          %p214 = pneg %p53
        $region14: #{tpu_custom_call.1} parent=11 // pred_check_branch
          %216 = sbr.rel (%p214) target = $region16
        $region15: #{tpu_custom_call.1} parent=11 // pred_region
          %s218 = ssub.s32 512, 512
          %219 = vsyncadd [#allocation4], %s218
          %s221 = sshll.u32 [#allocation3], 4
          %s222 = int_to_ptr.vmem [resolvable:$true] %s221
          %224 = dma.hbm_to_vmem [thread:$0]  %s0, 512, %s222, [#allocation4]
        $region16: #{tpu_custom_call.1} parent=11 // pred_fallthru
          _
        // Predicated region
        $region17: #{tpu_custom_call.1} parent=11 // pred_check
          %p225 = pneg %p126
        $region18: #{tpu_custom_call.1} parent=11 // pred_check_branch
          %227 = sbr.rel (%p225) target = $region20
        $region19: #{tpu_custom_call.1} parent=11 // pred_region
          %s229 = ssub.s32 8192, 8192
          %230 = vsyncadd [#allocation10], %s229
          %s231 = sshll.u32 [#allocation9], 4
          %s232 = int_to_ptr.vmem [resolvable:$true] %s231
          %237 = dma.hbm_to_vmem [thread:$0]  %s3, 8192, %s232, [#allocation10], 512, 512, 32
        $region20: #{tpu_custom_call.1} parent=11 // pred_fallthru
          _
        // Predicated region
        $region21: #{tpu_custom_call.1} parent=11 // pred_check
          %p238 = pneg %p147
        $region22: #{tpu_custom_call.1} parent=11 // pred_check_branch
          %240 = sbr.rel (%p238) target = $region24
        $region23: #{tpu_custom_call.1} parent=11 // pred_region
          _
        $region24: #{tpu_custom_call.1} parent=11 // pred_fallthru
          _
      $region12: #{tpu_custom_call.1} parent=5 // pred_fallthru
        _
      %p241 = scmp.lt.s32.totalorder %s20, 4
      // Predicated region
      $region25: #{tpu_custom_call.1} parent=5 // pred_check
        %p242 = pneg %p241
      $region26: #{tpu_custom_call.1} parent=5 // pred_check_branch
        %244 = sbr.rel (%p242) target = $region28
      $region27: #{tpu_custom_call.1} parent=5 // pred_region
        // Predicated region
        $region29: #{tpu_custom_call.1} parent=27 // pred_check
          %p245 = pneg %p73
        $region30: #{tpu_custom_call.1} parent=27 // pred_check_branch
          %247 = sbr.rel (%p245) target = $region32
        $region31: #{tpu_custom_call.1} parent=27 // pred_region
          %s248 = sand.u32 %s20, 1
          %s249 = scalar_lea.sflag [#allocation7], %s248
          %s250 = sand.u32 %s63, 1
          %s251 = smul.addr %s250, 256
          %s252 = scalar_lea.vmem [#allocation6], %s251
          %s253 = smul.u32 32, %s27
          %s255 = ssub.s32 4096, 4096
          %256 = vsyncadd %s249, %s255
          %s257 = smul.addr %s253, 128
          %s258 = scalar_lea.hbm %s1, %s257
          %s259 = sshll.u32 %s252, 4
          %s260 = int_to_ptr.vmem [resolvable:$true] %s259
          %265 = dma.hbm_to_vmem [thread:$0]  %s258, 4096, %s260, %s249, 128, 128, 8
        $region32: #{tpu_custom_call.1} parent=27 // pred_fallthru
          _
        // Predicated region
        $region33: #{tpu_custom_call.1} parent=27 // pred_check
          %p266 = pneg %p99
        $region34: #{tpu_custom_call.1} parent=27 // pred_check_branch
          %268 = sbr.rel (%p266) target = $region36
        $region35: #{tpu_custom_call.1} parent=27 // pred_region
          %s269 = sand.u32 %s20, 1
          %s270 = scalar_lea.sflag [#allocation7], %s269
          %s271 = sand.u32 %s89, 1
          %s272 = smul.addr %s271, 256
          %s273 = scalar_lea.vmem [#allocation8], %s272
          %s274 = smul.u32 32, %s27
          %s276 = ssub.s32 4096, 4096
          %277 = vsyncadd %s270, %s276
          %s278 = smul.addr %s274, 128
          %s279 = scalar_lea.hbm %s2, %s278
          %s280 = sshll.u32 %s273, 4
          %s281 = int_to_ptr.vmem [resolvable:$true] %s280
          %286 = dma.hbm_to_vmem [thread:$0]  %s279, 4096, %s281, %s270, 128, 128, 8
        $region36: #{tpu_custom_call.1} parent=27 // pred_fallthru
          _
        // Predicated region
        $region37: #{tpu_custom_call.1} parent=27 // pred_check
          %p287 = pneg %p167
        $region38: #{tpu_custom_call.1} parent=27 // pred_check_branch
          %289 = sbr.rel (%p287) target = $region40
        $region39: #{tpu_custom_call.1} parent=27 // pred_region
          %s290 = smul.u32 2, %s27
          %p291 = scmp.lt.s32.totalorder %s290, 3
          %s292 = scalar_select %p291, %s290, 3
          %s293 = scalar_lea.vmem %s5, %s292
          %s294 = smul.u32 2, %s27
        $region40: #{tpu_custom_call.1} parent=27 // pred_fallthru
          _
      $region28: #{tpu_custom_call.1} parent=5 // pred_fallthru
        _
      %p295 = scmp.le.s32.totalorder 1, %s20
      %p296 = scmp.lt.s32.totalorder %s20, 5
      %p297 = pnand %p295, %p296
      %p298 = pneg %p297
      // Predicated region
      $region41: #{tpu_custom_call.1} parent=5 // pred_check
        _
      $region42: #{tpu_custom_call.1} parent=5 // pred_check_branch
        %300 = sbr.rel (%p297) target = $region44
      $region43: #{tpu_custom_call.1} parent=5 // pred_region
        %s301 = ssub.s32 %s20, 1
        // Predicated region
        $region45: #{tpu_custom_call.1} parent=43 // pred_check
          %p302 = pneg %p53
        $region46: #{tpu_custom_call.1} parent=43 // pred_check_branch
          %304 = sbr.rel (%p302) target = $region48
        $region47: #{tpu_custom_call.1} parent=43 // pred_region
          %305 = dma.done [#allocation4], 512
        $region48: #{tpu_custom_call.1} parent=43 // pred_fallthru
          _
        %s306 = sand.u32 %s25, 1
        %s307 = scalar_lea.sflag [#allocation7], %s306
        %s308 = sand.u32 %s66, 1
        %s309 = smul.addr %s308, 256
        %s310 = scalar_lea.vmem [#allocation6], %s309
        // Predicated region
        $region49: #{tpu_custom_call.1} parent=43 // pred_check
          %p311 = pneg %p79
        $region50: #{tpu_custom_call.1} parent=43 // pred_check_branch
          %313 = sbr.rel (%p311) target = $region52
        $region51: #{tpu_custom_call.1} parent=43 // pred_region
          %314 = dma.done %s307, 4096
        $region52: #{tpu_custom_call.1} parent=43 // pred_fallthru
          _
        %s315 = sand.u32 %s25, 1
        %s316 = scalar_lea.sflag [#allocation7], %s315
        %s317 = sand.u32 %s92, 1
        %s318 = smul.addr %s317, 256
        %s319 = scalar_lea.vmem [#allocation8], %s318
        // Predicated region
        $region53: #{tpu_custom_call.1} parent=43 // pred_check
          %p320 = pneg %p105
        $region54: #{tpu_custom_call.1} parent=43 // pred_check_branch
          %322 = sbr.rel (%p320) target = $region56
        $region55: #{tpu_custom_call.1} parent=43 // pred_region
          %323 = dma.done %s316, 4096
        $region56: #{tpu_custom_call.1} parent=43 // pred_fallthru
          _
        // Predicated region
        $region57: #{tpu_custom_call.1} parent=43 // pred_check
          %p324 = pneg %p126
        $region58: #{tpu_custom_call.1} parent=43 // pred_check_branch
          %326 = sbr.rel (%p324) target = $region60
        $region59: #{tpu_custom_call.1} parent=43 // pred_region
          %327 = dma.done [#allocation10], 8192
        $region60: #{tpu_custom_call.1} parent=43 // pred_fallthru
          _
        %p328 = pneg %p53
        %p329 = pneg %p50
        %s330 = sand.u32 %s25, 1
        %s331 = scalar_lea.sflag [#allocation7], %s330
        %s332 = sand.u32 %s66, 1
        %s333 = smul.addr %s332, 256
        %s334 = scalar_lea.vmem [#allocation6], %s333
        %p335 = pneg %p79
        %p336 = pneg %p76
        %s337 = sand.u32 %s25, 1
        %s338 = scalar_lea.sflag [#allocation7], %s337
        %s339 = sand.u32 %s92, 1
        %s340 = smul.addr %s339, 256
        %s341 = scalar_lea.vmem [#allocation8], %s340
        %p342 = pneg %p105
        %p343 = pneg %p102
        %p344 = pneg %p126
        %p345 = pneg %p123
        %p346 = pneg %p147
        %p347 = pneg %p144
        %s348 = smul.u32 2, %s29
        %p349 = scmp.lt.s32.totalorder %s348, 3
        %s350 = scalar_select %p349, %s348, 3
        %s351 = scalar_lea.vmem %s5, %s350
        %p352 = pneg %p173
        %p353 = pneg %p170
        %p354 = pneg %p199
        %p355 = pneg %p196
        %s356 = sand.u32 %s186, 1
        %s357 = scalar_lea.sflag [#allocation5], %s356
        %s358 = sand.u32 %s186, 1
        %s359 = smul.addr %s358, 16
        %s360 = scalar_lea.vmem [#allocation11], %s359
        %s361 = smul.u32 32, %s29
        %s362 = smul.u32 32, %s29
        %s363 = smul.u32 2, %s29
        %p364 = scmp.lt.s32.totalorder %s363, 3
        %s365 = scalar_select %p364, %s363, 3
        %s366 = scalar_lea.vmem %s5, %s365
        %s367 = smul.u32 2, %s29
        %s368 = smul.u32 2, %s29
        %p369 = scmp.eq.s32.totalorder %s30, 0
        // Predicated region
        $region61: #{tpu_custom_call.1} parent=43 // pred_check
          %p370 = pneg %p369
        $region62: #{tpu_custom_call.1} parent=43 // pred_check_branch
          %372 = sbr.rel (%p370) target = $region64
        $region63: #{tpu_custom_call.1} parent=43 // pred_region
          %v373 = vld [vmem:[%s310] sm:$0xff]
          %v374 = vld [vmem:[%s310 + $0x8] sm:$0xff]
          %v375 = vld [vmem:[%s310 + $0x10] sm:$0xff]
          %v376 = vld [vmem:[%s310 + $0x18] sm:$0xff]
          %v377 = vld [vmem:[%s310 + $0x20] sm:$0xff]
          %v378 = vld [vmem:[%s310 + $0x28] sm:$0xff]
          %v379 = vld [vmem:[%s310 + $0x30] sm:$0xff]
          %v380 = vld [vmem:[%s310 + $0x38] sm:$0xff]
          %v381 = vld [vmem:[%s310 + $0x40] sm:$0xff]
          %v382 = vld [vmem:[%s310 + $0x48] sm:$0xff]
          %v383 = vld [vmem:[%s310 + $0x50] sm:$0xff]
          %v384 = vld [vmem:[%s310 + $0x58] sm:$0xff]
          %v385 = vld [vmem:[%s310 + $0x60] sm:$0xff]
          %v386 = vld [vmem:[%s310 + $0x68] sm:$0xff]
          %v387 = vld [vmem:[%s310 + $0x70] sm:$0xff]
          %v388 = vld [vmem:[%s310 + $0x78] sm:$0xff]
          %v389 = vld [vmem:[%s310 + $0x80] sm:$0xff]
          %v390 = vld [vmem:[%s310 + $0x88] sm:$0xff]
          %v391 = vld [vmem:[%s310 + $0x90] sm:$0xff]
          %v392 = vld [vmem:[%s310 + $0x98] sm:$0xff]
          %v393 = vld [vmem:[%s310 + $0xa0] sm:$0xff]
          %v394 = vld [vmem:[%s310 + $0xa8] sm:$0xff]
          %v395 = vld [vmem:[%s310 + $0xb0] sm:$0xff]
          %v396 = vld [vmem:[%s310 + $0xb8] sm:$0xff]
          %v397 = vld [vmem:[%s310 + $0xc0] sm:$0xff]
          %v398 = vld [vmem:[%s310 + $0xc8] sm:$0xff]
          %v399 = vld [vmem:[%s310 + $0xd0] sm:$0xff]
          %v400 = vld [vmem:[%s310 + $0xd8] sm:$0xff]
          %v401 = vld [vmem:[%s310 + $0xe0] sm:$0xff]
          %v402 = vld [vmem:[%s310 + $0xe8] sm:$0xff]
          %v403 = vld [vmem:[%s310 + $0xf0] sm:$0xff]
          %v404 = vld [vmem:[%s310 + $0xf8] sm:$0xff]
          %v405 = vld [vmem:[%s319] sm:$0xff]
          %v406 = vld [vmem:[%s319 + $0x8] sm:$0xff]
          %v407 = vld [vmem:[%s319 + $0x10] sm:$0xff]
          %v408 = vld [vmem:[%s319 + $0x18] sm:$0xff]
          %v409 = vld [vmem:[%s319 + $0x20] sm:$0xff]
          %v410 = vld [vmem:[%s319 + $0x28] sm:$0xff]
          %v411 = vld [vmem:[%s319 + $0x30] sm:$0xff]
          %v412 = vld [vmem:[%s319 + $0x38] sm:$0xff]
          %v413 = vld [vmem:[%s319 + $0x40] sm:$0xff]
          %v414 = vld [vmem:[%s319 + $0x48] sm:$0xff]
          %v415 = vld [vmem:[%s319 + $0x50] sm:$0xff]
          %v416 = vld [vmem:[%s319 + $0x58] sm:$0xff]
          %v417 = vld [vmem:[%s319 + $0x60] sm:$0xff]
          %v418 = vld [vmem:[%s319 + $0x68] sm:$0xff]
          %v419 = vld [vmem:[%s319 + $0x70] sm:$0xff]
          %v420 = vld [vmem:[%s319 + $0x78] sm:$0xff]
          %v421 = vld [vmem:[%s319 + $0x80] sm:$0xff]
          %v422 = vld [vmem:[%s319 + $0x88] sm:$0xff]
          %v423 = vld [vmem:[%s319 + $0x90] sm:$0xff]
          %v424 = vld [vmem:[%s319 + $0x98] sm:$0xff]
          %v425 = vld [vmem:[%s319 + $0xa0] sm:$0xff]
          %v426 = vld [vmem:[%s319 + $0xa8] sm:$0xff]
          %v427 = vld [vmem:[%s319 + $0xb0] sm:$0xff]
          %v428 = vld [vmem:[%s319 + $0xb8] sm:$0xff]
          %v429 = vld [vmem:[%s319 + $0xc0] sm:$0xff]
          %v430 = vld [vmem:[%s319 + $0xc8] sm:$0xff]
          %v431 = vld [vmem:[%s319 + $0xd0] sm:$0xff]
          %v432 = vld [vmem:[%s319 + $0xd8] sm:$0xff]
          %v433 = vld [vmem:[%s319 + $0xe0] sm:$0xff]
          %v434 = vld [vmem:[%s319 + $0xe8] sm:$0xff]
          %v435 = vld [vmem:[%s319 + $0xf0] sm:$0xff]
          %v436 = vld [vmem:[%s319 + $0xf8] sm:$0xff]
          %v437 = vadd.f32 %v373, %v405
          %v438 = vadd.f32 %v374, %v406
          %v439 = vadd.f32 %v375, %v407
          %v440 = vadd.f32 %v376, %v408
          %v441 = vadd.f32 %v377, %v409
          %v442 = vadd.f32 %v378, %v410
          %v443 = vadd.f32 %v379, %v411
          %v444 = vadd.f32 %v380, %v412
          %v445 = vadd.f32 %v381, %v413
          %v446 = vadd.f32 %v382, %v414
          %v447 = vadd.f32 %v383, %v415
          %v448 = vadd.f32 %v384, %v416
          %v449 = vadd.f32 %v385, %v417
          %v450 = vadd.f32 %v386, %v418
          %v451 = vadd.f32 %v387, %v419
          %v452 = vadd.f32 %v388, %v420
          %v453 = vadd.f32 %v389, %v421
          %v454 = vadd.f32 %v390, %v422
          %v455 = vadd.f32 %v391, %v423
          %v456 = vadd.f32 %v392, %v424
          %v457 = vadd.f32 %v393, %v425
          %v458 = vadd.f32 %v394, %v426
          %v459 = vadd.f32 %v395, %v427
          %v460 = vadd.f32 %v396, %v428
          %v461 = vadd.f32 %v397, %v429
          %v462 = vadd.f32 %v398, %v430
          %v463 = vadd.f32 %v399, %v431
          %v464 = vadd.f32 %v400, %v432
          %v465 = vadd.f32 %v401, %v433
          %v466 = vadd.f32 %v402, %v434
          %v467 = vadd.f32 %v403, %v435
          %v468 = vadd.f32 %v404, %v436
          %469 = vst [vmem:[#allocation2] sm:$0xff] %v437
          %470 = vst [vmem:[#allocation2 + $0x8] sm:$0xff] %v438
          %471 = vst [vmem:[#allocation2 + $0x10] sm:$0xff] %v439
          %472 = vst [vmem:[#allocation2 + $0x18] sm:$0xff] %v440
          %473 = vst [vmem:[#allocation2 + $0x20] sm:$0xff] %v441
          %474 = vst [vmem:[#allocation2 + $0x28] sm:$0xff] %v442
          %475 = vst [vmem:[#allocation2 + $0x30] sm:$0xff] %v443
          %476 = vst [vmem:[#allocation2 + $0x38] sm:$0xff] %v444
          %477 = vst [vmem:[#allocation2 + $0x40] sm:$0xff] %v445
          %478 = vst [vmem:[#allocation2 + $0x48] sm:$0xff] %v446
          %479 = vst [vmem:[#allocation2 + $0x50] sm:$0xff] %v447
          %480 = vst [vmem:[#allocation2 + $0x58] sm:$0xff] %v448
          %481 = vst [vmem:[#allocation2 + $0x60] sm:$0xff] %v449
          %482 = vst [vmem:[#allocation2 + $0x68] sm:$0xff] %v450
          %483 = vst [vmem:[#allocation2 + $0x70] sm:$0xff] %v451
          %484 = vst [vmem:[#allocation2 + $0x78] sm:$0xff] %v452
          %485 = vst [vmem:[#allocation2 + $0x80] sm:$0xff] %v453
          %486 = vst [vmem:[#allocation2 + $0x88] sm:$0xff] %v454
          %487 = vst [vmem:[#allocation2 + $0x90] sm:$0xff] %v455
          %488 = vst [vmem:[#allocation2 + $0x98] sm:$0xff] %v456
          %489 = vst [vmem:[#allocation2 + $0xa0] sm:$0xff] %v457
          %490 = vst [vmem:[#allocation2 + $0xa8] sm:$0xff] %v458
          %491 = vst [vmem:[#allocation2 + $0xb0] sm:$0xff] %v459
          %492 = vst [vmem:[#allocation2 + $0xb8] sm:$0xff] %v460
          %493 = vst [vmem:[#allocation2 + $0xc0] sm:$0xff] %v461
          %494 = vst [vmem:[#allocation2 + $0xc8] sm:$0xff] %v462
          %495 = vst [vmem:[#allocation2 + $0xd0] sm:$0xff] %v463
          %496 = vst [vmem:[#allocation2 + $0xd8] sm:$0xff] %v464
          %497 = vst [vmem:[#allocation2 + $0xe0] sm:$0xff] %v465
          %498 = vst [vmem:[#allocation2 + $0xe8] sm:$0xff] %v466
          %499 = vst [vmem:[#allocation2 + $0xf0] sm:$0xff] %v467
          %500 = vst [vmem:[#allocation2 + $0xf8] sm:$0xff] %v468
          %v501 = vld [vmem:[%s366] sm:$0x3]
          %v502 = vld [vmem:[%s4] sm:$0xff]
          %v504 = vlaneseq
          %v505 = vshrl.u32 %v504, 7
          %v506 = vsub.s32 0, %v505
          %v507 = vrot.slane %v501, %v506
          %v508 = vlaneseq
          %v509 = vshrl.u32 %v508, 7
          %v510 = vsub.s32 1, %v509
          %v511 = vrot.slane %v501, %v510
          %515 = vset.pattern.permute.xlu0 0
          %516 = vperm.xlu0 %515, %v502
          %v517 = vpop.permute.xlu0 %516
          %v519 = vadd.f32 %v507, %v517
          %v520 = vadd.f32 %v511, %v517
          %521 = vst [vmem:[%s360] sm:$0xff] %v519
          %522 = vst [vmem:[%s360 + $0x8] sm:$0xff] %v520
        $region64: #{tpu_custom_call.1} parent=43 // pred_fallthru
          _
        %s523 = smul.u32 %s30, 256
        %s524 = sshra.s32 %s523, 7
        %s525 = sand.u32 %s523, 127
        %s526 = smul.addr %s524, 8
        %s527 = scalar_lea.vmem [#allocation3], %s526
        %v528 = vld [vmem:[%s527] sm:$0xff]
        %v529 = vld [vmem:[%s527 + $0x8] sm:$0xff]
        %s530 = smul.addr %s524, 8
        %s531 = scalar_lea.vmem [#allocation9], %s530
        %v532 = vld [vmem:[%s531] sm:$0xff]
        %v533 = vld [vmem:[%s531 + $0x8] sm:$0xff]
        %v534 = vld [vmem:[%s531 + $0x20] sm:$0xff]
        %v535 = vld [vmem:[%s531 + $0x28] sm:$0xff]
        %v536 = vld [vmem:[%s531 + $0x40] sm:$0xff]
        %v537 = vld [vmem:[%s531 + $0x48] sm:$0xff]
        %v538 = vld [vmem:[%s531 + $0x60] sm:$0xff]
        %v539 = vld [vmem:[%s531 + $0x68] sm:$0xff]
        %v540 = vld [vmem:[%s531 + $0x80] sm:$0xff]
        %v541 = vld [vmem:[%s531 + $0x88] sm:$0xff]
        %v542 = vld [vmem:[%s531 + $0xa0] sm:$0xff]
        %v543 = vld [vmem:[%s531 + $0xa8] sm:$0xff]
        %v544 = vld [vmem:[%s531 + $0xc0] sm:$0xff]
        %v545 = vld [vmem:[%s531 + $0xc8] sm:$0xff]
        %v546 = vld [vmem:[%s531 + $0xe0] sm:$0xff]
        %v547 = vld [vmem:[%s531 + $0xe8] sm:$0xff]
        %v548 = vld [vmem:[%s531 + $0x100] sm:$0xff]
        %v549 = vld [vmem:[%s531 + $0x108] sm:$0xff]
        %v550 = vld [vmem:[%s531 + $0x120] sm:$0xff]
        %v551 = vld [vmem:[%s531 + $0x128] sm:$0xff]
        %v552 = vld [vmem:[%s531 + $0x140] sm:$0xff]
        %v553 = vld [vmem:[%s531 + $0x148] sm:$0xff]
        %v554 = vld [vmem:[%s531 + $0x160] sm:$0xff]
        %v555 = vld [vmem:[%s531 + $0x168] sm:$0xff]
        %v556 = vld [vmem:[%s531 + $0x180] sm:$0xff]
        %v557 = vld [vmem:[%s531 + $0x188] sm:$0xff]
        %v558 = vld [vmem:[%s531 + $0x1a0] sm:$0xff]
        %v559 = vld [vmem:[%s531 + $0x1a8] sm:$0xff]
        %v560 = vld [vmem:[%s531 + $0x1c0] sm:$0xff]
        %v561 = vld [vmem:[%s531 + $0x1c8] sm:$0xff]
        %v562 = vld [vmem:[%s531 + $0x1e0] sm:$0xff]
        %v563 = vld [vmem:[%s531 + $0x1e8] sm:$0xff]
        %v564 = vld [vmem:[#allocation2] sm:$0xff]
        %v565 = vld [vmem:[#allocation2 + $0x8] sm:$0xff]
        %v566 = vld [vmem:[#allocation2 + $0x10] sm:$0xff]
        %v567 = vld [vmem:[#allocation2 + $0x18] sm:$0xff]
        %v568 = vld [vmem:[#allocation2 + $0x20] sm:$0xff]
        %v569 = vld [vmem:[#allocation2 + $0x28] sm:$0xff]
        %v570 = vld [vmem:[#allocation2 + $0x30] sm:$0xff]
        %v571 = vld [vmem:[#allocation2 + $0x38] sm:$0xff]
        %v572 = vld [vmem:[#allocation2 + $0x40] sm:$0xff]
        %v573 = vld [vmem:[#allocation2 + $0x48] sm:$0xff]
        %v574 = vld [vmem:[#allocation2 + $0x50] sm:$0xff]
        %v575 = vld [vmem:[#allocation2 + $0x58] sm:$0xff]
        %v576 = vld [vmem:[#allocation2 + $0x60] sm:$0xff]
        %v577 = vld [vmem:[#allocation2 + $0x68] sm:$0xff]
        %v578 = vld [vmem:[#allocation2 + $0x70] sm:$0xff]
        %v579 = vld [vmem:[#allocation2 + $0x78] sm:$0xff]
        %v580 = vld [vmem:[#allocation2 + $0x80] sm:$0xff]
        %v581 = vld [vmem:[#allocation2 + $0x88] sm:$0xff]
        %v582 = vld [vmem:[#allocation2 + $0x90] sm:$0xff]
        %v583 = vld [vmem:[#allocation2 + $0x98] sm:$0xff]
        %v584 = vld [vmem:[#allocation2 + $0xa0] sm:$0xff]
        %v585 = vld [vmem:[#allocation2 + $0xa8] sm:$0xff]
        %v586 = vld [vmem:[#allocation2 + $0xb0] sm:$0xff]
        %v587 = vld [vmem:[#allocation2 + $0xb8] sm:$0xff]
        %v588 = vld [vmem:[#allocation2 + $0xc0] sm:$0xff]
        %v589 = vld [vmem:[#allocation2 + $0xc8] sm:$0xff]
        %v590 = vld [vmem:[#allocation2 + $0xd0] sm:$0xff]
        %v591 = vld [vmem:[#allocation2 + $0xd8] sm:$0xff]
        %v592 = vld [vmem:[#allocation2 + $0xe0] sm:$0xff]
        %v593 = vld [vmem:[#allocation2 + $0xe8] sm:$0xff]
        %v594 = vld [vmem:[#allocation2 + $0xf0] sm:$0xff]
        %v595 = vld [vmem:[#allocation2 + $0xf8] sm:$0xff]
        %596 = vmatprep.subr.mxu0 %v533
        %597 = vmatpush1.msra.mxu0 %v532
        %598 = vmatprep.subr.mxu0 %v535
        %599 = vmatpush1.msra.mxu0 %v534
        %600 = vmatprep.subr.mxu0 %v537
        %601 = vmatpush1.msra.mxu0 %v536
        %602 = vmatprep.subr.mxu0 %v539
        %603 = vmatpush1.msra.mxu0 %v538
        %604 = vmatprep.subr.mxu0 %v541
        %605 = vmatpush1.msra.mxu0 %v540
        %606 = vmatprep.subr.mxu0 %v543
        %607 = vmatpush1.msra.mxu0 %v542
        %608 = vmatprep.subr.mxu0 %v545
        %609 = vmatpush1.msra.mxu0 %v544
        %610 = vmatprep.subr.mxu0 %v547
        %611 = vmatpush1.msra.mxu0 %v546
        %612 = vmatprep.subr.mxu0 %v549
        %613 = vmatpush1.msra.mxu0 %v548
        %614 = vmatprep.subr.mxu0 %v551
        %615 = vmatpush1.msra.mxu0 %v550
        %616 = vmatprep.subr.mxu0 %v553
        %617 = vmatpush1.msra.mxu0 %v552
        %618 = vmatprep.subr.mxu0 %v555
        %619 = vmatpush1.msra.mxu0 %v554
        %620 = vmatprep.subr.mxu0 %v557
        %621 = vmatpush1.msra.mxu0 %v556
        %622 = vmatprep.subr.mxu0 %v559
        %623 = vmatpush1.msra.mxu0 %v558
        %624 = vmatprep.subr.mxu0 %v561
        %625 = vmatpush1.msra.mxu0 %v560
        %626 = vmatprep.subr.mxu0 %v563
        %627 = vmatpush1.msra.mxu0 %v562
        %628 = vmatprep.subr.mxu0 0.0
        %629 = vmatpush1.msra.mxu0 0.0
        %630 = vmatprep.subr.mxu0 0.0
        %631 = vmatpush1.msra.mxu0 0.0
        %632 = vmatprep.subr.mxu0 0.0
        %633 = vmatpush1.msra.mxu0 0.0
        %634 = vmatprep.subr.mxu0 0.0
        %635 = vmatpush1.msra.mxu0 0.0
        %636 = vmatprep.subr.mxu0 0.0
        %637 = vmatpush1.msra.mxu0 0.0
        %638 = vmatprep.subr.mxu0 0.0
        %639 = vmatpush1.msra.mxu0 0.0
        %640 = vmatprep.subr.mxu0 0.0
        %641 = vmatpush1.msra.mxu0 0.0
        %642 = vmatprep.subr.mxu0 0.0
        %643 = vmatpush1.msra.mxu0 0.0
        %644 = vmatprep.subr.mxu0 0.0
        %645 = vmatpush1.msra.mxu0 0.0
        %646 = vmatprep.subr.mxu0 0.0
        %647 = vmatpush1.msra.mxu0 0.0
        %648 = vmatprep.subr.mxu0 0.0
        %649 = vmatpush1.msra.mxu0 0.0
        %650 = vmatprep.subr.mxu0 0.0
        %651 = vmatpush1.msra.mxu0 0.0
        %652 = vmatprep.subr.mxu0 0.0
        %653 = vmatpush1.msra.mxu0 0.0
        %654 = vmatprep.subr.mxu0 0.0
        %655 = vmatpush1.msra.mxu0 0.0
        %656 = vmatprep.subr.mxu0 0.0
        %657 = vmatpush1.msra.mxu0 0.0
        %658 = vmatprep.subr.mxu0 0.0
        %659 = vmatpush1.msra.mxu0 0.0
        %660 = vmatprep.mubr.f32.mxu0 0.0
        %661 = vmatmul.mubr.f32.gmra.mrb[0].mxu0 %v564
        %v662 = vpop.f32.mrb[0].mxu0
        %v663 = vadd.f32 0.0, %v662
        %v664 = vpop.f32.mrb[0].mxu0
        %v665 = vadd.f32 0.0, %v664
        %666 = vmatprep.mubr.f32.mxu0 0.0
        %667 = vmatmul.mubr.f32.gmra.mrb[0].mxu0 %v565
        %v668 = vpop.f32.mrb[0].mxu0
        %v669 = vadd.f32 0.0, %v668
        %v670 = vpop.f32.mrb[0].mxu0
        %v671 = vadd.f32 0.0, %v670
        %672 = vmatprep.mubr.f32.mxu0 0.0
        %673 = vmatmul.mubr.f32.gmra.mrb[0].mxu0 %v566
        %v674 = vpop.f32.mrb[0].mxu0
        %v675 = vadd.f32 0.0, %v674
        %v676 = vpop.f32.mrb[0].mxu0
        %v677 = vadd.f32 0.0, %v676
        %678 = vmatprep.mubr.f32.mxu0 0.0
        %679 = vmatmul.mubr.f32.gmra.mrb[0].mxu0 %v567
        %v680 = vpop.f32.mrb[0].mxu0
        %v681 = vadd.f32 0.0, %v680
        %v682 = vpop.f32.mrb[0].mxu0
        %v683 = vadd.f32 0.0, %v682
        %684 = vmatprep.mubr.f32.mxu0 0.0
        %685 = vmatmul.mubr.f32.gmra.mrb[0].mxu0 %v568
        %v686 = vpop.f32.mrb[0].mxu0
        %v687 = vadd.f32 0.0, %v686
        %v688 = vpop.f32.mrb[0].mxu0
        %v689 = vadd.f32 0.0, %v688
        %690 = vmatprep.mubr.f32.mxu0 0.0
        %691 = vmatmul.mubr.f32.gmra.mrb[0].mxu0 %v569
        %v692 = vpop.f32.mrb[0].mxu0
        %v693 = vadd.f32 0.0, %v692
        %v694 = vpop.f32.mrb[0].mxu0
        %v695 = vadd.f32 0.0, %v694
        %696 = vmatprep.mubr.f32.mxu0 0.0
        %697 = vmatmul.mubr.f32.gmra.mrb[0].mxu0 %v570
        %v698 = vpop.f32.mrb[0].mxu0
        %v699 = vadd.f32 0.0, %v698
        %v700 = vpop.f32.mrb[0].mxu0
        %v701 = vadd.f32 0.0, %v700
        %702 = vmatprep.mubr.f32.mxu0 0.0
        %703 = vmatmul.mubr.f32.gmra.mrb[0].mxu0 %v571
        %v704 = vpop.f32.mrb[0].mxu0
        %v705 = vadd.f32 0.0, %v704
        %v706 = vpop.f32.mrb[0].mxu0
        %v707 = vadd.f32 0.0, %v706
        %708 = vmatprep.mubr.f32.mxu0 0.0
        %709 = vmatmul.mubr.f32.gmra.mrb[0].mxu0 %v572
        %v710 = vpop.f32.mrb[0].mxu0
        %v711 = vadd.f32 0.0, %v710
        %v712 = vpop.f32.mrb[0].mxu0
        %v713 = vadd.f32 0.0, %v712
        %714 = vmatprep.mubr.f32.mxu0 0.0
        %715 = vmatmul.mubr.f32.gmra.mrb[0].mxu0 %v573
        %v716 = vpop.f32.mrb[0].mxu0
        %v717 = vadd.f32 0.0, %v716
        %v718 = vpop.f32.mrb[0].mxu0
        %v719 = vadd.f32 0.0, %v718
        %720 = vmatprep.mubr.f32.mxu0 0.0
        %721 = vmatmul.mubr.f32.gmra.mrb[0].mxu0 %v574
        %v722 = vpop.f32.mrb[0].mxu0
        %v723 = vadd.f32 0.0, %v722
        %v724 = vpop.f32.mrb[0].mxu0
        %v725 = vadd.f32 0.0, %v724
        %726 = vmatprep.mubr.f32.mxu0 0.0
        %727 = vmatmul.mubr.f32.gmra.mrb[0].mxu0 %v575
        %v728 = vpop.f32.mrb[0].mxu0
        %v729 = vadd.f32 0.0, %v728
        %v730 = vpop.f32.mrb[0].mxu0
        %v731 = vadd.f32 0.0, %v730
        %732 = vmatprep.mubr.f32.mxu0 0.0
        %733 = vmatmul.mubr.f32.gmra.mrb[0].mxu0 %v576
        %v734 = vpop.f32.mrb[0].mxu0
        %v735 = vadd.f32 0.0, %v734
        %v736 = vpop.f32.mrb[0].mxu0
        %v737 = vadd.f32 0.0, %v736
        %738 = vmatprep.mubr.f32.mxu0 0.0
        %739 = vmatmul.mubr.f32.gmra.mrb[0].mxu0 %v577
        %v740 = vpop.f32.mrb[0].mxu0
        %v741 = vadd.f32 0.0, %v740
        %v742 = vpop.f32.mrb[0].mxu0
        %v743 = vadd.f32 0.0, %v742
        %744 = vmatprep.mubr.f32.mxu0 0.0
        %745 = vmatmul.mubr.f32.gmra.mrb[0].mxu0 %v578
        %v746 = vpop.f32.mrb[0].mxu0
        %v747 = vadd.f32 0.0, %v746
        %v748 = vpop.f32.mrb[0].mxu0
        %v749 = vadd.f32 0.0, %v748
        %750 = vmatprep.mubr.f32.mxu0 0.0
        %751 = vmatmul.mubr.f32.gmra.mrb[0].mxu0 %v579
        %v752 = vpop.f32.mrb[0].mxu0
        %v753 = vadd.f32 0.0, %v752
        %v754 = vpop.f32.mrb[0].mxu0
        %v755 = vadd.f32 0.0, %v754
        %756 = vmatprep.mubr.f32.mxu0 0.0
        %757 = vmatmul.mubr.f32.gmra.mrb[0].mxu0 %v580
        %v758 = vpop.f32.mrb[0].mxu0
        %v759 = vadd.f32 0.0, %v758
        %v760 = vpop.f32.mrb[0].mxu0
        %v761 = vadd.f32 0.0, %v760
        %762 = vmatprep.mubr.f32.mxu0 0.0
        %763 = vmatmul.mubr.f32.gmra.mrb[0].mxu0 %v581
        %v764 = vpop.f32.mrb[0].mxu0
        %v765 = vadd.f32 0.0, %v764
        %v766 = vpop.f32.mrb[0].mxu0
        %v767 = vadd.f32 0.0, %v766
        %768 = vmatprep.mubr.f32.mxu0 0.0
        %769 = vmatmul.mubr.f32.gmra.mrb[0].mxu0 %v582
        %v770 = vpop.f32.mrb[0].mxu0
        %v771 = vadd.f32 0.0, %v770
        %v772 = vpop.f32.mrb[0].mxu0
        %v773 = vadd.f32 0.0, %v772
        %774 = vmatprep.mubr.f32.mxu0 0.0
        %775 = vmatmul.mubr.f32.gmra.mrb[0].mxu0 %v583
        %v776 = vpop.f32.mrb[0].mxu0
        %v777 = vadd.f32 0.0, %v776
        %v778 = vpop.f32.mrb[0].mxu0
        %v779 = vadd.f32 0.0, %v778
        %780 = vmatprep.mubr.f32.mxu0 0.0
        %781 = vmatmul.mubr.f32.gmra.mrb[0].mxu0 %v584
        %v782 = vpop.f32.mrb[0].mxu0
        %v783 = vadd.f32 0.0, %v782
        %v784 = vpop.f32.mrb[0].mxu0
        %v785 = vadd.f32 0.0, %v784
        %786 = vmatprep.mubr.f32.mxu0 0.0
        %787 = vmatmul.mubr.f32.gmra.mrb[0].mxu0 %v585
        %v788 = vpop.f32.mrb[0].mxu0
        %v789 = vadd.f32 0.0, %v788
        %v790 = vpop.f32.mrb[0].mxu0
        %v791 = vadd.f32 0.0, %v790
        %792 = vmatprep.mubr.f32.mxu0 0.0
        %793 = vmatmul.mubr.f32.gmra.mrb[0].mxu0 %v586
        %v794 = vpop.f32.mrb[0].mxu0
        %v795 = vadd.f32 0.0, %v794
        %v796 = vpop.f32.mrb[0].mxu0
        %v797 = vadd.f32 0.0, %v796
        %798 = vmatprep.mubr.f32.mxu0 0.0
        %799 = vmatmul.mubr.f32.gmra.mrb[0].mxu0 %v587
        %v800 = vpop.f32.mrb[0].mxu0
        %v801 = vadd.f32 0.0, %v800
        %v802 = vpop.f32.mrb[0].mxu0
        %v803 = vadd.f32 0.0, %v802
        %804 = vmatprep.mubr.f32.mxu0 0.0
        %805 = vmatmul.mubr.f32.gmra.mrb[0].mxu0 %v588
        %v806 = vpop.f32.mrb[0].mxu0
        %v807 = vadd.f32 0.0, %v806
        %v808 = vpop.f32.mrb[0].mxu0
        %v809 = vadd.f32 0.0, %v808
        %810 = vmatprep.mubr.f32.mxu0 0.0
        %811 = vmatmul.mubr.f32.gmra.mrb[0].mxu0 %v589
        %v812 = vpop.f32.mrb[0].mxu0
        %v813 = vadd.f32 0.0, %v812
        %v814 = vpop.f32.mrb[0].mxu0
        %v815 = vadd.f32 0.0, %v814
        %816 = vmatprep.mubr.f32.mxu0 0.0
        %817 = vmatmul.mubr.f32.gmra.mrb[0].mxu0 %v590
        %v818 = vpop.f32.mrb[0].mxu0
        %v819 = vadd.f32 0.0, %v818
        %v820 = vpop.f32.mrb[0].mxu0
        %v821 = vadd.f32 0.0, %v820
        %822 = vmatprep.mubr.f32.mxu0 0.0
        %823 = vmatmul.mubr.f32.gmra.mrb[0].mxu0 %v591
        %v824 = vpop.f32.mrb[0].mxu0
        %v825 = vadd.f32 0.0, %v824
        %v826 = vpop.f32.mrb[0].mxu0
        %v827 = vadd.f32 0.0, %v826
        %828 = vmatprep.mubr.f32.mxu0 0.0
        %829 = vmatmul.mubr.f32.gmra.mrb[0].mxu0 %v592
        %v830 = vpop.f32.mrb[0].mxu0
        %v831 = vadd.f32 0.0, %v830
        %v832 = vpop.f32.mrb[0].mxu0
        %v833 = vadd.f32 0.0, %v832
        %834 = vmatprep.mubr.f32.mxu0 0.0
        %835 = vmatmul.mubr.f32.gmra.mrb[0].mxu0 %v593
        %v836 = vpop.f32.mrb[0].mxu0
        %v837 = vadd.f32 0.0, %v836
        %v838 = vpop.f32.mrb[0].mxu0
        %v839 = vadd.f32 0.0, %v838
        %840 = vmatprep.mubr.f32.mxu0 0.0
        %841 = vmatmul.mubr.f32.gmra.mrb[0].mxu0 %v594
        %v842 = vpop.f32.mrb[0].mxu0
        %v843 = vadd.f32 0.0, %v842
        %v844 = vpop.f32.mrb[0].mxu0
        %v845 = vadd.f32 0.0, %v844
        %846 = vmatprep.mubr.f32.mxu0 0.0
        %847 = vmatmul.mubr.f32.gmra.mrb[0].mxu0 %v595
        %v848 = vpop.f32.mrb[0].mxu0
        %v849 = vadd.f32 0.0, %v848
        %v850 = vpop.f32.mrb[0].mxu0
        %v851 = vadd.f32 0.0, %v850
        %852 = vdwg.mxu0
        %853 = vmatprep.subr.mxu0 %v665
        %854 = vmatpush1.xpose.msra.mxu0 %v663
        %855 = vmatprep.subr.mxu0 %v671
        %856 = vmatpush1.xpose.msra.mxu0 %v669
        %857 = vmatprep.subr.mxu0 %v677
        %858 = vmatpush1.xpose.msra.mxu0 %v675
        %859 = vmatprep.subr.mxu0 %v683
        %860 = vmatpush1.xpose.msra.mxu0 %v681
        %861 = vmatprep.subr.mxu0 %v689
        %862 = vmatpush1.xpose.msra.mxu0 %v687
        %863 = vmatprep.subr.mxu0 %v695
        %864 = vmatpush1.xpose.msra.mxu0 %v693
        %865 = vmatprep.subr.mxu0 %v701
        %866 = vmatpush1.xpose.msra.mxu0 %v699
        %867 = vmatprep.subr.mxu0 %v707
        %868 = vmatpush1.xpose.msra.mxu0 %v705
        %869 = vmatprep.subr.mxu0 %v713
        %870 = vmatpush1.xpose.msra.mxu0 %v711
        %871 = vmatprep.subr.mxu0 %v719
        %872 = vmatpush1.xpose.msra.mxu0 %v717
        %873 = vmatprep.subr.mxu0 %v725
        %874 = vmatpush1.xpose.msra.mxu0 %v723
        %875 = vmatprep.subr.mxu0 %v731
        %876 = vmatpush1.xpose.msra.mxu0 %v729
        %877 = vmatprep.subr.mxu0 %v737
        %878 = vmatpush1.xpose.msra.mxu0 %v735
        %879 = vmatprep.subr.mxu0 %v743
        %880 = vmatpush1.xpose.msra.mxu0 %v741
        %881 = vmatprep.subr.mxu0 %v749
        %882 = vmatpush1.xpose.msra.mxu0 %v747
        %883 = vmatprep.subr.mxu0 %v755
        %884 = vmatpush1.xpose.msra.mxu0 %v753
        %885 = vmatprep.subr.mxu0 %v761
        %886 = vmatpush1.xpose.msra.mxu0 %v759
        %887 = vmatprep.subr.mxu0 %v767
        %888 = vmatpush1.xpose.msra.mxu0 %v765
        %889 = vmatprep.subr.mxu0 %v773
        %890 = vmatpush1.xpose.msra.mxu0 %v771
        %891 = vmatprep.subr.mxu0 %v779
        %892 = vmatpush1.xpose.msra.mxu0 %v777
        %893 = vmatprep.subr.mxu0 %v785
        %894 = vmatpush1.xpose.msra.mxu0 %v783
        %895 = vmatprep.subr.mxu0 %v791
        %896 = vmatpush1.xpose.msra.mxu0 %v789
        %897 = vmatprep.subr.mxu0 %v797
        %898 = vmatpush1.xpose.msra.mxu0 %v795
        %899 = vmatprep.subr.mxu0 %v803
        %900 = vmatpush1.xpose.msra.mxu0 %v801
        %901 = vmatprep.subr.mxu0 %v809
        %902 = vmatpush1.xpose.msra.mxu0 %v807
        %903 = vmatprep.subr.mxu0 %v815
        %904 = vmatpush1.xpose.msra.mxu0 %v813
        %905 = vmatprep.subr.mxu0 %v821
        %906 = vmatpush1.xpose.msra.mxu0 %v819
        %907 = vmatprep.subr.mxu0 %v827
        %908 = vmatpush1.xpose.msra.mxu0 %v825
        %909 = vmatprep.subr.mxu0 %v833
        %910 = vmatpush1.xpose.msra.mxu0 %v831
        %911 = vmatprep.subr.mxu0 %v839
        %912 = vmatpush1.xpose.msra.mxu0 %v837
        %913 = vmatprep.subr.mxu0 %v845
        %914 = vmatpush1.xpose.msra.mxu0 %v843
        %915 = vmatprep.subr.mxu0 %v851
        %916 = vmatpush1.xpose.msra.mxu0 %v849
        %917 = vmatprep.mubr.f32.mxu0 %v529
        %918 = vmatmul.mubr.f32.gmra.mrb[0].mxu0 %v528
        %v919 = vpop.f32.mrb[0].mxu0
        %v920 = vadd.f32 0.0, %v919
        %v921 = vpop.f32.mrb[0].mxu0
        %v922 = vadd.f32 0.0, %v921
        %923 = vdwg.mxu0
        %v924 = vld [vmem:[%s360] sm:$0xff]
        %v925 = vld [vmem:[%s360 + $0x8] sm:$0xff]
        %v926 = vadd.f32 %v924, %v920
        %v927 = vadd.f32 %v925, %v922
        %928 = vst [vmem:[%s360] sm:$0xff] %v926
        %929 = vst [vmem:[%s360 + $0x8] sm:$0xff] %v927
        %s930 = sand.u32 %s186, 1
        %s931 = scalar_lea.sflag [#allocation5], %s930
        %s932 = sand.u32 %s186, 1
        %s933 = smul.addr %s932, 16
        %s934 = scalar_lea.vmem [#allocation11], %s933
        // Predicated region
        $region65: #{tpu_custom_call.1} parent=43 // pred_check
          %p935 = pneg %p196
        $region66: #{tpu_custom_call.1} parent=43 // pred_check_branch
          %937 = sbr.rel (%p935) target = $region68
        $region67: #{tpu_custom_call.1} parent=43 // pred_region
          %s938 = smul.u32 2, %s29
          %s940 = ssub.s32 256, 256
          %941 = vsyncadd %s931, %s940
          %s942 = smul.addr %s938, 128
          %s943 = scalar_lea.hbm %s6, %s942
          %s945 = sshll.u32 %s934, 4
          %s946 = int_to_ptr.vmem [resolvable:$true] %s945
          %948 = dma.vmem_to_hbm [thread:$0]  %s946, 256, %s943, %s931
        $region68: #{tpu_custom_call.1} parent=43 // pred_fallthru
          _
      $region44: #{tpu_custom_call.1} parent=5 // pred_fallthru
        _
      %p949 = scmp.le.s32.totalorder 2, %s20
      // Predicated region
      $region69: #{tpu_custom_call.1} parent=5 // pred_check
        %p950 = pneg %p949
      $region70: #{tpu_custom_call.1} parent=5 // pred_check_branch
        %952 = sbr.rel (%p950) target = $region72
      $region71: #{tpu_custom_call.1} parent=5 // pred_region
        %s953 = ssub.s32 %s20, 2
        // Predicated region
        $region73: #{tpu_custom_call.1} parent=71 // pred_check
          %p954 = pneg %p202
        $region74: #{tpu_custom_call.1} parent=71 // pred_check_branch
          %956 = sbr.rel (%p954) target = $region76
        $region75: #{tpu_custom_call.1} parent=71 // pred_region
          %s957 = sand.u32 %s187, 1
          %s958 = scalar_lea.sflag [#allocation5], %s957
          %s959 = sand.u32 %s187, 1
          %s960 = smul.addr %s959, 16
          %s961 = scalar_lea.vmem [#allocation11], %s960
          %962 = dma.done %s958, 256
        $region76: #{tpu_custom_call.1} parent=71 // pred_fallthru
          _
      $region72: #{tpu_custom_call.1} parent=5 // pred_fallthru
        _
    $region6: #{tpu_custom_call.1} parent=1 // loop_footer
      %s24 = sadd.s32 1, %s20
    $region7: #{tpu_custom_call.1} parent=1 // loop_footer_branch
      %19 = sbr.rel target = $region3
    $region8: #{tpu_custom_call.1} parent=1 // loop_exit
      _
    %963 = vsyncpa [#allocation4], 1
    %s964 = scalar_lea.sflag [#allocation4], 1
    %965 = vsyncpa %s964, 1
    %966 = vsyncpa [#allocation7], 1
    %s967 = scalar_lea.sflag [#allocation7], 1
    %968 = vsyncpa %s967, 1
    %969 = vsyncpa [#allocation10], 1
    %970 = vsyncpa [#allocation5], 1
    %s971 = scalar_lea.sflag [#allocation5], 1
    %972 = vsyncpa %s971, 1

</llo_original>
